<compile_context>
chip_gen: v6e
topology: v6e:2x2x1
jax: 0.10.0
libtpu: 0.0.40
codegen_flags: <defaults>
</compile_context>

<pallas_src>
import functools

import jax
import jax.numpy as jnp
from jax.experimental import pallas as pl
from jax.experimental.pallas import tpu as pltpu


def _translation2d_flat_kernel(x_ref, o_ref, *, s1, s2, h_shift, H):
    """x_ref / o_ref: (B, W*H) VMEM tiles; spatial plane flattened on lanes.

    A flat roll by s1 = w*H + h is correct for every output element whose
    in-row column j satisfies j >= h; the remaining lanes need the source
    shifted by an extra +H, i.e. flat roll by s2 = (s1 - H) % (W*H).  Both
    rolls are independent XLU lane rotations from x; one VPU select (with a
    (1, W*H) broadcast mask) stitches them together.
    """
    x = x_ref[...]
    WH = x.shape[-1]

    if h_shift == 0:
        # Pure W shift: a single flat rotation is exact.
        o_ref[...] = pltpu.roll(x, shift=s1, axis=1) if s1 else x
        return

    r1 = pltpu.roll(x, shift=s1, axis=1) if s1 else x
    r2 = pltpu.roll(x, shift=s2, axis=1) if s2 else x

    # Mask on a single (1, WH) row; jnp.where broadcasts it across sublanes,
    # so the per-vreg cost is one select (no per-vreg iota / modulo / compare).
    lane = jax.lax.broadcasted_iota(jnp.int32, (1, WH), 1)
    if (H & (H - 1)) == 0:
        j_in_row = lane & (H - 1)          # power-of-two H: cheap bit-and
    else:
        j_in_row = lane % H                # only on one (1, WH) row — negligible
    o_ref[...] = jnp.where(j_in_row >= h_shift, r1, r2)


def _translation2d_3d_kernel(x_ref, o_ref, *, w_shift, h_shift):
    """Fallback for W*H not lane-aligned: (B, W, H) tiles, any W, H.

    Note: if either W or H were a multiple of 128, W*H would be too, so this
    path only ever sees planes where no lane-dense layout exists; we still use
    XLU rotates (pltpu.roll) instead of jnp.roll's concat-of-slices.
    """
    x = x_ref[...]
    if h_shift:
        x = pltpu.roll(x, shift=h_shift, axis=2)   # H roll (lanes)
    if w_shift:
        x = pltpu.roll(x, shift=w_shift, axis=1)   # W roll (sublanes)
    o_ref[...] = x


def _hw_block_params():
    """(target_block_bytes, vmem_limit_bytes, prefer_even_steps) per TPU gen."""
    kind = ""
    try:
        kind = jax.devices()[0].device_kind.lower()
    except Exception:
        pass
    if "v7" in kind:
        # 64 MiB physical VMEM per TC; 2 TCs share the "parallel" grid axis.
        return 4 << 20, 40 * 1024 * 1024, True
    # v5e / v6e: 128 MiB physical VMEM, single TensorCore -> one big block.
    return 8 << 20, 64 * 1024 * 1024, False


def _rows_per_block(n_rows, row_bytes, target_bytes, sub_mult, prefer_even_steps):
    """Pick the batched row count per block.

    Keeps each block near `target_bytes`, rounds to the dtype's packed-sublane
    multiple, prefers divisors of n_rows (no ragged masked writeback), and on
    2-TC parts prefers an even number of equal steps so both cores get work.
    """
    if n_rows <= sub_mult:
        return n_rows
    cap = max(sub_mult, (int(target_bytes // row_bytes) // sub_mult) * sub_mult)
    cap = min(cap, n_rows)
    if not prefer_even_steps and cap >= n_rows:
        return n_rows                      # single step: one less step of overhead
    best_odd = None
    for b in range(cap, 0, -1):
        if n_rows % b:
            continue
        if b % sub_mult and b != n_rows:
            continue
        if prefer_even_steps and (n_rows // b) % 2:
            if best_odd is None:
                best_odd = b
            continue
        return b
    if best_odd is not None:
        return best_odd
    return min(cap, n_rows)                # ragged last block; Pallas masks writeback


def translation2d(x, w_disp, h_disp, *, target_block_bytes=None, donate_input=False):
    """Pallas equivalent of Translation2D.set_symmetry((w, h)); forward(x).

    x: (N, C, W, H). w_disp / h_disp: static Python ints (the module's
    self.w / self.h).  Set donate_input=True (and donate at the jit boundary)
    to alias the output onto the input buffer.
    """
    N, C, W, H = x.shape
    w_s = int(w_disp) % W
    h_s = int(h_disp) % H
    if w_s == 0 and h_s == 0:
        return x                            # identity shift: no HBM traffic at all

    NC, WH = N * C, W * H
    itemsize = jnp.dtype(x.dtype).itemsize
    sub_mult = 8 * max(1, 4 // itemsize)    # 8 f32 / 16 bf16 / 32 int8 sublanes

    default_target, vmem_limit, prefer_even = _hw_block_params()
    if target_block_bytes is None:
        target_block_bytes = default_target
    # in + out double-buffered = 4 live blocks; keep ~20% headroom for temps.
    target_block_bytes = max(1, min(target_block_bytes, vmem_limit // 5))

    compiler_params = pltpu.CompilerParams(
        dimension_semantics=("parallel",),
        vmem_limit_bytes=vmem_limit,
    )
    io_aliases = {0: 0} if donate_input else {}

    if WH % 128 == 0:
        # Lane-dense fast path: (N*C, W*H) rows, roll done on the lane axis.
        xr = x.reshape(NC, WH)
        B = _rows_per_block(NC, WH * itemsize, target_block_bytes, sub_mult,
                            prefer_even)
        s1 = (w_s * H + h_s) % WH
        s2 = (s1 - H) % WH
        kernel = functools.partial(
            _translation2d_flat_kernel, s1=s1, s2=s2, h_shift=h_s, H=H)
        out = pl.pallas_call(
            kernel,
            out_shape=jax.ShapeDtypeStruct((NC, WH), x.dtype),
            grid=(pl.cdiv(NC, B),),
            in_specs=[pl.BlockSpec((B, WH), lambda i: (i, 0))],
            out_specs=pl.BlockSpec((B, WH), lambda i: (i, 0)),
            compiler_params=compiler_params,
            input_output_aliases=io_aliases,
        )(xr)
        return out.reshape(N, C, W, H)

    # General fallback: (B, W, H) blocks (full W, H satisfy the (8,128) rule
    # for any size); lanes are padded to 128 so it is store-bound, but it
    # always lowers and still uses XLU rotates.
    xr = x.reshape(NC, W, H)
    padded_row_bytes = (-(-W // 8) * 8) * (-(-H // 128) * 128) * itemsize
    B = _rows_per_block(NC, padded_row_bytes, target_block_bytes, 1, prefer_even)
    kernel = functools.partial(_translation2d_3d_kernel, w_shift=w_s, h_shift=h_s)
    out = pl.pallas_call(
        kernel,
        out_shape=jax.ShapeDtypeStruct((NC, W, H), x.dtype),
        grid=(pl.cdiv(NC, B),),
        in_specs=[pl.BlockSpec((B, W, H), lambda i: (i, 0, 0))],
        out_specs=pl.BlockSpec((B, W, H), lambda i: (i, 0, 0)),
        compiler_params=compiler_params,
        input_output_aliases=io_aliases,
    )(xr)
    return out.reshape(N, C, W, H)


if __name__ == "__main__":
    key = jax.random.PRNGKey(0)
    x = jax.random.normal(key, (2, 4, 16, 16), dtype=jnp.float32)

    # Deterministic symmetry parameters (stand-in for set_symmetry((w, h));
    # sample_symmetry uses host-side Python RNG so we fix them here).
    # Cover: general shift, identity, negative/large shifts, h ≡ 0 (mod H).
    for (w_disp, h_disp) in [(2, -3), (0, 0), (-1, 5), (3, 16)]:
        out = jax.block_until_ready(translation2d(x, w_disp, h_disp))
        # Pure-JAX reference of the exact torch indexing semantics:
        # x[..., (arange(W)-w)%W, :][..., (arange(H)-h)%H] == roll(x, (w, h))
        ref = jnp.roll(x, shift=(w_disp, h_disp), axis=(-2, -1))
        assert out.shape == x.shape and out.dtype == x.dtype
        assert jnp.allclose(out, ref), (w_disp, h_disp)

    print("KERNEL_OK")
</pallas_src>

<mosaic_0001>
module attributes {stable_mosaic.version = 11 : i64} {
  func.func @_translation2d_flat_kernel(%arg0: i32, %arg1: memref<8x256xf32, #tpu.memory_space<vmem>>, %arg2: memref<8x256xf32, #tpu.memory_space<vmem>>) attributes {dimension_semantics = [#tpu.dimension_semantics<parallel>], iteration_bounds = array<i64: 1>, scalar_prefetch = 0 : i64, scratch_operands = 0 : i64, tpu.core_type = #tpu.core_type<tc>, window_params = [{transform_indices = @transform_0, window_bounds = array<i64: 8, 256>}, {transform_indices = @transform_1, window_bounds = array<i64: 8, 256>}]} {
    %c0 = arith.constant 0 : index
    %c0_0 = arith.constant 0 : index
    %0 = vector.load %arg1[%c0, %c0_0] : memref<8x256xf32, #tpu.memory_space<vmem>>, vector<8x256xf32>
    %c45_i32 = arith.constant 45 : i32
    %1 = tpu.dynamic_rotate %0 by %c45_i32 dim 1 : vector<8x256xf32>, i32 -> vector<8x256xf32>
    %c29_i32 = arith.constant 29 : i32
    %2 = tpu.dynamic_rotate %0 by %c29_i32 dim 1 : vector<8x256xf32>, i32 -> vector<8x256xf32>
    %3 = tpu.iota {dimensions = array<i32: 1>} : vector<1x256xi32>
    %c15_i32 = arith.constant 15 : i32
    %4 = vector.broadcast %c15_i32 : i32 to vector<1x256xi32>
    %5 = arith.andi %3, %4 : vector<1x256xi32>
    %c13_i32 = arith.constant 13 : i32
    %6 = vector.broadcast %c13_i32 : i32 to vector<1x256xi32>
    %7 = arith.cmpi sge, %5, %6 : vector<1x256xi32>
    %8 = vector.shape_cast %7 : vector<1x256xi1> to vector<1x256xi1>
    %9 = vector.broadcast %8 : vector<1x256xi1> to vector<8x256xi1>
    %10 = arith.select %9, %1, %2 : vector<8x256xi1>, vector<8x256xf32>
    %c0_1 = arith.constant 0 : index
    %c0_2 = arith.constant 0 : index
    %11 = vector.load %arg2[%c0_1, %c0_2] : memref<8x256xf32, #tpu.memory_space<vmem>>, vector<8x256xf32>
    tpu.vector_store %arg2[%c0_1, %c0_2], %10 {strides = array<i32>} : memref<8x256xf32, #tpu.memory_space<vmem>>, vector<8x256xf32>,
    return
  }
  func.func @transform_0(%arg0: i32) -> (i32, i32) {
    %c0_i32 = arith.constant 0 : i32
    %c0_i32_0 = arith.constant 0 : i32
    return %arg0, %c0_i32 : i32, i32
  }
  func.func @transform_1(%arg0: i32) -> (i32, i32) {
    %c0_i32 = arith.constant 0 : i32
    %c0_i32_0 = arith.constant 0 : i32
    return %arg0, %c0_i32 : i32, i32
  }
}

</mosaic_0001>

<llo_original>
// kernel: tpu_custom_call.1
$region0: #{tpu_custom_call.1}
  #allocation0 [shape = 'u32[]', space=smem, size = 0x4, offset = 0x4, fixed_abs, tag = 'smem constant byte address 0x4 - core index']
  #allocation1 [shape = 'u32[144,128]{1,0:T(1,128)}', space=vmem, size = 0x12000, scoped, tag = 'internal scratch']
  %s0 = inlined_call_operand.hbm [shape: f32[8,256], index: 0, kind: input, shape index: {}]
  %s1 = inlined_call_operand.hbm [shape: f32[8,256], index: 1, kind: output, shape index: {}]
  %s2 = sld [smem:[#allocation0]]
  $region18: #{tpu_custom_call.1} parent=0
    _
  %s4 = ssub.s32 1, %s2
  %s5 = scalar_select 0, %s4, %s2
  $region1: #{tpu_custom_call.1} parent=0
    #allocation2 [shape = 'u8[8192]{0}', space=vmem, size = 0x2000, scoped, tag = 'input window, operand 0, single buffered']
    #allocation3 [shape = 's32[1]{0}', space=sflag, size = 0x4, scoped, tag = 'scoped memory for tpu_custom_call.1']
    #allocation4 [shape = 's32[1]{0}', space=sflag, size = 0x4, scoped, tag = 'scoped memory for tpu_custom_call.1']
    #allocation5 [shape = 'u8[8192]{0}', space=vmem, size = 0x2000, scoped, tag = 'output window, operand 0, single buffered']
    %6 = vsyncpa [#allocation3], 0
    %7 = vsyncpa [#allocation4], 0
    // Predicated region
    $region2: #{tpu_custom_call.1} parent=1 // pred_check
      _
    $region3: #{tpu_custom_call.1} parent=1 // pred_check_branch
      %9 = sbr.rel (0) target = $region5
    $region4: #{tpu_custom_call.1} parent=1 // pred_region
      %s11 = ssub.s32 256, 256
      %12 = vsyncadd [#allocation3], %s11
      %s14 = sshll.u32 [#allocation2], 4
      %s15 = int_to_ptr.vmem [resolvable:$true] %s14
      %17 = dma.hbm_to_vmem [thread:$0]  %s0, 256, %s15, [#allocation3]
    $region5: #{tpu_custom_call.1} parent=1 // pred_fallthru
      _
    // Predicated region
    $region6: #{tpu_custom_call.1} parent=1 // pred_check
      _
    $region7: #{tpu_custom_call.1} parent=1 // pred_check_branch
      %19 = sbr.rel (0) target = $region9
    $region8: #{tpu_custom_call.1} parent=1 // pred_region
      %20 = dma.done [#allocation3], 256
    $region9: #{tpu_custom_call.1} parent=1 // pred_fallthru
      _
    %v21 = vld [vmem:[#allocation2] sm:$0xff]
    %v22 = vld [vmem:[#allocation2 + $0x8] sm:$0xff]
    %23 = vrot.lane.b32.xlu0 %v21, 45
    %v24 = vpop.permute.xlu0 %23
    %25 = vrot.lane.b32.xlu0 %v22, 45
    %v26 = vpop.permute.xlu0 %25
    %v27 = vlaneseq
    %v28 = vand.u32 %v27, 127
    %vm29 = vcmp.lt.s32.totalorder %v28, 45
    %v30 = vsel %vm29, %v24, %v26
    %v31 = vsel %vm29, %v26, %v24
    %32 = vrot.lane.b32.xlu0 %v21, 29
    %v33 = vpop.permute.xlu0 %32
    %34 = vrot.lane.b32.xlu0 %v22, 29
    %v35 = vpop.permute.xlu0 %34
    %vm36 = vcmp.lt.s32.totalorder %v28, 29
    %v37 = vsel %vm36, %v33, %v35
    %v38 = vsel %vm36, %v35, %v33
    %v39 = vadd.s32 %v28, 128
    %v40 = vand.u32 %v28, 15
    %v41 = vand.u32 %v39, 15
    %vm42 = vcmp.ge.s32.totalorder %v40, 13
    %vm43 = vcmp.ge.s32.totalorder %v41, 13
    %v44 = vsel %vm42, 1, 0
    %v45 = vsel %vm43, 1, 0
    %vm46 = vcmp.eq.s32.totalorder %v44, 1
    %vm47 = vcmp.eq.s32.totalorder %v45, 1
    %v48 = vsel %vm46, %v31, %v38
    %v49 = vsel %vm47, %v30, %v37
    %50 = vst [vmem:[#allocation5] sm:$0xff] %v48
    %51 = vst [vmem:[#allocation5 + $0x8] sm:$0xff] %v49
    // Predicated region
    $region10: #{tpu_custom_call.1} parent=1 // pred_check
      _
    $region11: #{tpu_custom_call.1} parent=1 // pred_check_branch
      %53 = sbr.rel (0) target = $region13
    $region12: #{tpu_custom_call.1} parent=1 // pred_region
      %s55 = ssub.s32 256, 256
      %56 = vsyncadd [#allocation4], %s55
      %s58 = sshll.u32 [#allocation5], 4
      %s59 = int_to_ptr.vmem [resolvable:$true] %s58
      %61 = dma.vmem_to_hbm [thread:$0]  %s59, 256, %s1, [#allocation4]
    $region13: #{tpu_custom_call.1} parent=1 // pred_fallthru
      _
    // Predicated region
    $region14: #{tpu_custom_call.1} parent=1 // pred_check
      _
    $region15: #{tpu_custom_call.1} parent=1 // pred_check_branch
      %63 = sbr.rel (0) target = $region17
    $region16: #{tpu_custom_call.1} parent=1 // pred_region
      %64 = dma.done [#allocation4], 256
    $region17: #{tpu_custom_call.1} parent=1 // pred_fallthru
      _
    %65 = vsyncpa [#allocation3], 1
    %66 = vsyncpa [#allocation4], 1

</llo_original>
